<compile_context>
chip_gen: v7x
topology: tpu7x:2x2x1
jax: 0.10.0
libtpu: 0.0.40
codegen_flags: <defaults>
</compile_context>

<pallas_src>
import jax
import jax.numpy as jnp
from jax import lax
from jax.experimental import pallas as pl
from jax.experimental.pallas import tpu as pltpu


def _round_up(x, m):
    return ((x + m - 1) // m) * m


# ---------------- Pass A: batched input projection (parallel) ---------------
def _proj_kernel(ci_ref, w_ref, b_ref, z_ref):
    z_ref[...] = (jnp.dot(ci_ref[...], w_ref[...],
                          preferred_element_type=jnp.float32) + b_ref[...])


# ---------------- Pass B: serial recurrence (chunked grid, inner loop) ------
def _make_recurrence_kernel(Tc, Bp, T):
    needs_guard = (T % Tc) != 0          # only trace the guard if T is padded
    unroll = min(Tc, 8)

    def kernel(z_ref, hid0_ref, w1h_ref, y1_ref, hid_ref):
        c = pl.program_id(0)

        @pl.when(c == 0)
        def _():
            hid_ref[...] = hid0_ref[...]

        w1h = w1h_ref[...]               # resident (n1, n1) weight
        hid = hid_ref[...]               # carried hidden (full packed tile)

        def step(s, hid):
            row = pl.multiple_of(s * Bp, Bp)
            y1 = (z_ref[pl.ds(row, Bp), :]
                  + jnp.dot(hid, w1h, preferred_element_type=jnp.float32))
            y1_ref[pl.ds(row, Bp), :] = y1
            if needs_guard:
                y1 = jnp.where(c * Tc + s < T, y1, hid)
            return y1                    # full y1 tile is the next hidden
                                         # (W1_h rows >= hidden_size are zero)

        hid = lax.fori_loop(0, Tc, step, hid, unroll=unroll)
        hid_ref[...] = hid               # carry across chunks / final hidden

    return kernel


# ---------------- Pass C: output head + log-softmax (parallel) --------------
def _head_kernel(y_ref, w2_ref, b2_ref, o_ref):
    logits = (jnp.dot(y_ref[...], w2_ref[...],
                      preferred_element_type=jnp.float32) + b2_ref[...])
    # padded lanes carry -1e30 bias: never win the max, exp underflows to 0.
    m = jnp.max(logits, axis=-1, keepdims=True)
    s = logits - m
    lse = jnp.log(jnp.sum(jnp.exp(s), axis=-1, keepdims=True))
    # Dropout(0.1) in eval mode: identity.
    o_ref[...] = s - lse


# ---------------- One-time weight packing -----------------------------------
def prepare_params(params, n_categories, input_size, hidden_size, output_size):
    w_i2h, b_i2h = params["i2h"]   # (hid, n_cat+in+hid)
    w_i2o, b_i2o = params["i2o"]   # (out, n_cat+in+hid)
    w_o2o, b_o2o = params["o2o"]   # (out, hid+out)

    ci = n_categories + input_size
    ci_pad = _round_up(ci, 128)
    n1 = _round_up(hidden_size + output_size, 128)   # hidden|output share tile
    out_pad = _round_up(output_size, 128)
    hs, os_ = hidden_size, output_size

    wih_t = w_i2h.T   # (ci+hid, hid)
    wio_t = w_i2o.T   # (ci+hid, out)
    woo_t = w_o2o.T   # (hid+out, out)

    # W1_ci: rows = [category|input], cols = [hidden | output | pad].
    w1_ci = jnp.zeros((ci_pad, n1), jnp.float32)
    w1_ci = w1_ci.at[:ci, :hs].set(wih_t[:ci])
    w1_ci = w1_ci.at[:ci, hs:hs + os_].set(wio_t[:ci])

    # W1_h: rows = packed y1 lanes (rows >= hidden_size are zero).
    w1_h = jnp.zeros((n1, n1), jnp.float32)
    w1_h = w1_h.at[:hs, :hs].set(wih_t[ci:])
    w1_h = w1_h.at[:hs, hs:hs + os_].set(wio_t[ci:])

    b1 = jnp.zeros((1, n1), jnp.float32)
    b1 = b1.at[0, :hs].set(b_i2h)
    b1 = b1.at[0, hs:hs + os_].set(b_i2o)

    # W2 consumes packed y1 directly (padded rows are zero).
    w2 = jnp.zeros((n1, out_pad), jnp.float32)
    w2 = w2.at[:hs, :os_].set(woo_t[:hs])
    w2 = w2.at[hs:hs + os_, :os_].set(woo_t[hs:])

    b2 = jnp.full((1, out_pad), -1e30, jnp.float32)
    b2 = b2.at[0, :os_].set(b_o2o)

    return {"w1_ci": w1_ci, "w1_h": w1_h, "b1": b1, "w2": w2, "b2": b2,
            "dims": (n_categories, input_size, hidden_size, output_size,
                     ci_pad, n1, out_pad)}


# ---------------- Sequence forward -------------------------------------------
def rnn_forward_sequence(category, input_seq, hidden0, packed, *, t_chunk=128):
    """category: [B, n_cat]  input_seq: [T, B, in]  hidden0: [B, hid]
    returns (log_probs [T, B, out], final_hidden [B, hid])."""
    n_cat, in_sz, hid_sz, out_sz, ci_pad, n1, out_pad = packed["dims"]
    T, B, _ = input_seq.shape
    Bp = _round_up(B, 8)
    Tc = min(T, t_chunk)
    n_chunks = pl.cdiv(T, Tc)
    T_pad = n_chunks * Tc
    M = T_pad * Bp          # flattened (time, batch) rows
    RM = Tc * Bp            # rows per grid chunk

    # (category ++ input[t]) padded and flattened to lane-dense (M, ci_pad).
    ci_seq = jnp.zeros((T_pad, Bp, ci_pad), jnp.float32)
    ci_seq = ci_seq.at[:T, :B, :n_cat].set(
        jnp.broadcast_to(category[None], (T, B, n_cat)))
    ci_seq = ci_seq.at[:T, :B, n_cat:n_cat + in_sz].set(input_seq)
    ci_flat = ci_seq.reshape(M, ci_pad)

    hid0 = jnp.zeros((Bp, n1), jnp.float32).at[:B, :hid_sz].set(hidden0)

    rows = lambda c: (c, 0)
    const = lambda c: (0, 0)

    # --- Pass A: input projection (parallel) ---
    z_flat = pl.pallas_call(
        _proj_kernel,
        out_shape=jax.ShapeDtypeStruct((M, n1), jnp.float32),
        grid_spec=pltpu.PrefetchScalarGridSpec(
            num_scalar_prefetch=0,
            grid=(n_chunks,),
            in_specs=[pl.BlockSpec((RM, ci_pad), rows),
                      pl.BlockSpec((ci_pad, n1), const),
                      pl.BlockSpec((1, n1), const)],
            out_specs=pl.BlockSpec((RM, n1), rows)),
        compiler_params=pltpu.CompilerParams(
            dimension_semantics=("parallel",)),
    )(ci_flat, packed["w1_ci"], packed["b1"])

    # --- Pass B: serial recurrence ---
    y1_flat, hid_final = pl.pallas_call(
        _make_recurrence_kernel(Tc, Bp, T),
        out_shape=(jax.ShapeDtypeStruct((M, n1), jnp.float32),
                   jax.ShapeDtypeStruct((Bp, n1), jnp.float32)),
        grid_spec=pltpu.PrefetchScalarGridSpec(
            num_scalar_prefetch=0,
            grid=(n_chunks,),
            in_specs=[pl.BlockSpec((RM, n1), rows),
                      pl.BlockSpec((Bp, n1), const),
                      pl.BlockSpec((n1, n1), const)],
            out_specs=[pl.BlockSpec((RM, n1), rows),
                       pl.BlockSpec((Bp, n1), const)]),
        compiler_params=pltpu.CompilerParams(
            dimension_semantics=("arbitrary",)),
    )(z_flat, hid0, packed["w1_h"])

    # --- Pass C: output head + log-softmax (parallel) ---
    logp_flat = pl.pallas_call(
        _head_kernel,
        out_shape=jax.ShapeDtypeStruct((M, out_pad), jnp.float32),
        grid_spec=pltpu.PrefetchScalarGridSpec(
            num_scalar_prefetch=0,
            grid=(n_chunks,),
            in_specs=[pl.BlockSpec((RM, n1), rows),
                      pl.BlockSpec((n1, out_pad), const),
                      pl.BlockSpec((1, out_pad), const)],
            out_specs=pl.BlockSpec((RM, out_pad), rows)),
        compiler_params=pltpu.CompilerParams(
            dimension_semantics=("parallel",)),
    )(y1_flat, packed["w2"], packed["b2"])

    logp = logp_flat.reshape(T_pad, Bp, out_pad)[:T, :B, :out_sz]
    return logp, hid_final[:B, :hid_sz]


def rnn_forward(category, inp, hidden, packed):
    """Single-step forward matching the PyTorch module signature."""
    logp_seq, hid = rnn_forward_sequence(category, inp[None], hidden, packed)
    return logp_seq[0], hid


# ---------------- Synthetic params + pure-JAX reference ----------------------
def init_params(key, n_categories, input_size, hidden_size, output_size):
    def linear(k, out_f, in_f):
        k1, k2 = jax.random.split(k)
        bound = 1.0 / jnp.sqrt(in_f)
        w = jax.random.uniform(k1, (out_f, in_f), jnp.float32, -bound, bound)
        b = jax.random.uniform(k2, (out_f,), jnp.float32, -bound, bound)
        return w, b

    k1, k2, k3 = jax.random.split(key, 3)
    comb = n_categories + input_size + hidden_size
    return {
        "i2h": linear(k1, hidden_size, comb),
        "i2o": linear(k2, output_size, comb),
        "o2o": linear(k3, output_size, hidden_size + output_size),
    }


def rnn_ref_step(category, inp, hidden, params):
    x = jnp.concatenate([category, inp, hidden], axis=1)
    w_i2h, b_i2h = params["i2h"]
    w_i2o, b_i2o = params["i2o"]
    w_o2o, b_o2o = params["o2o"]
    new_hidden = x @ w_i2h.T + b_i2h
    out = x @ w_i2o.T + b_i2o
    comb = jnp.concatenate([new_hidden, out], axis=1)
    out = comb @ w_o2o.T + b_o2o
    out = jax.nn.log_softmax(out, axis=1)
    return out, new_hidden


def rnn_ref_sequence(category, input_seq, hidden0, params):
    def step(h, x):
        logp, h_new = rnn_ref_step(category, x, h, params)
        return h_new, logp
    h_final, logps = lax.scan(step, hidden0, input_seq)
    return logps, h_final


if __name__ == "__main__":
    B = 2
    T = 8                 # sequence length
    n_categories = 4
    input_size = 16
    hidden_size = 32
    output_size = 16

    key = jax.random.PRNGKey(0)
    kp, kc, ki, kh = jax.random.split(key, 4)

    params = init_params(kp, n_categories, input_size, hidden_size, output_size)
    packed = prepare_params(params, n_categories, input_size, hidden_size,
                            output_size)

    category = jax.random.normal(kc, (B, n_categories), jnp.float32)
    input_seq = jax.random.normal(ki, (T, B, input_size), jnp.float32)
    hidden0 = jax.random.normal(kh, (B, hidden_size), jnp.float32)

    # Fused sequence (3 Pallas passes).
    logp_seq, hid_final = rnn_forward_sequence(category, input_seq, hidden0,
                                               packed)
    jax.block_until_ready((logp_seq, hid_final))

    logp_ref, hid_ref_final = rnn_ref_sequence(category, input_seq, hidden0,
                                               params)
    assert jnp.allclose(logp_seq, logp_ref, atol=1e-4, rtol=1e-4)
    assert jnp.allclose(hid_final, hid_ref_final, atol=1e-4, rtol=1e-4)

    # Single-step call (original module signature).
    logp1, hid1 = rnn_forward(category, input_seq[0], hidden0, packed)
    jax.block_until_ready((logp1, hid1))
    logp1_ref, hid1_ref = rnn_ref_step(category, input_seq[0], hidden0, params)
    assert jnp.allclose(logp1, logp1_ref, atol=1e-4, rtol=1e-4)
    assert jnp.allclose(hid1, hid1_ref, atol=1e-4, rtol=1e-4)

    print("KERNEL_OK")
</pallas_src>

<mosaic_0001>
module attributes {stable_mosaic.version = 11 : i64} {
  func.func @_proj_kernel(%arg0: i32, %arg1: memref<64x128xf32, #tpu.memory_space<vmem>>, %arg2: memref<128x128xf32, #tpu.memory_space<vmem>>, %arg3: memref<1x128xf32, #tpu.memory_space<vmem>>, %arg4: memref<64x128xf32, #tpu.memory_space<vmem>>) attributes {dimension_semantics = [#tpu.dimension_semantics<parallel>], iteration_bounds = array<i64: 1>, scalar_prefetch = 0 : i64, scratch_operands = 0 : i64, tpu.core_type = #tpu.core_type<tc>, window_params = [{transform_indices = @transform_0, window_bounds = array<i64: 64, 128>}, {pipeline_mode = #tpu.pipeline_mode<synchronous>, transform_indices = @transform_1, window_bounds = array<i64: 128, 128>}, {pipeline_mode = #tpu.pipeline_mode<synchronous>, transform_indices = @transform_2, window_bounds = array<i64: 1, 128>}, {transform_indices = @transform_3, window_bounds = array<i64: 64, 128>}]} {
    %c0 = arith.constant 0 : index
    %c0_0 = arith.constant 0 : index
    %0 = vector.load %arg1[%c0, %c0_0] : memref<64x128xf32, #tpu.memory_space<vmem>>, vector<64x128xf32>
    %c0_1 = arith.constant 0 : index
    %c0_2 = arith.constant 0 : index
    %1 = vector.load %arg2[%c0_1, %c0_2] : memref<128x128xf32, #tpu.memory_space<vmem>>, vector<128x128xf32>
    %cst = arith.constant dense<0.000000e+00> : vector<64x128xf32>
    %2 = tpu.matmul %0, %1, %cst {dimension_numbers = #tpu.dot_dimension_numbers<[1], [0], [0], [1], [0, 0, 1, 1], [], []>} : vector<64x128xf32>, vector<128x128xf32>, vector<64x128xf32> -> vector<64x128xf32>
    %c0_3 = arith.constant 0 : index
    %c0_4 = arith.constant 0 : index
    %3 = vector.load %arg3[%c0_3, %c0_4] : memref<1x128xf32, #tpu.memory_space<vmem>>, vector<1x128xf32>
    %4 = vector.broadcast %3 : vector<1x128xf32> to vector<64x128xf32>
    %5 = arith.addf %2, %4 : vector<64x128xf32>
    %c0_5 = arith.constant 0 : index
    %c0_6 = arith.constant 0 : index
    %6 = vector.load %arg4[%c0_5, %c0_6] : memref<64x128xf32, #tpu.memory_space<vmem>>, vector<64x128xf32>
    tpu.vector_store %arg4[%c0_5, %c0_6], %5 {strides = array<i32>} : memref<64x128xf32, #tpu.memory_space<vmem>>, vector<64x128xf32>,
    return
  }
  func.func @transform_0(%arg0: i32) -> (i32, i32) {
    %c0_i32 = arith.constant 0 : i32
    %c0_i32_0 = arith.constant 0 : i32
    return %arg0, %c0_i32 : i32, i32
  }
  func.func @transform_1(%arg0: i32) -> (i32, i32) {
    %c0_i32 = arith.constant 0 : i32
    %c0_i32_0 = arith.constant 0 : i32
    %c0_i32_1 = arith.constant 0 : i32
    return %c0_i32, %c0_i32_0 : i32, i32
  }
  func.func @transform_2(%arg0: i32) -> (i32, i32) {
    %c0_i32 = arith.constant 0 : i32
    %c0_i32_0 = arith.constant 0 : i32
    %c0_i32_1 = arith.constant 0 : i32
    return %c0_i32, %c0_i32_0 : i32, i32
  }
  func.func @transform_3(%arg0: i32) -> (i32, i32) {
    %c0_i32 = arith.constant 0 : i32
    %c0_i32_0 = arith.constant 0 : i32
    return %arg0, %c0_i32 : i32, i32
  }
}

</mosaic_0001>

<llo_original>
// kernel: tpu_custom_call.1
$region0: #{tpu_custom_call.1}
  #allocation0 [shape = 'u32[]', space=smem, size = 0x4, offset = 0x4, fixed_abs, tag = 'smem constant byte address 0x4 - core index']
  #allocation1 [shape = 'u32[144,128]{1,0:T(1,128)}', space=vmem, size = 0x12000, scoped, tag = 'internal scratch']
  %s0 = inlined_call_operand.hbm [shape: f32[64,128], index: 0, kind: input, shape index: {}]
  %s1 = inlined_call_operand.hbm [shape: f32[128,128], index: 1, kind: input, shape index: {}]
  %s2 = inlined_call_operand.vmem [shape: f32[1,128], index: 2, kind: input, shape index: {}]
  %s3 = inlined_call_operand.hbm [shape: f32[64,128], index: 3, kind: output, shape index: {}]
  %s4 = sld [smem:[#allocation0]]
  $region30: #{tpu_custom_call.1} parent=0
    _
  %s6 = ssub.s32 1, %s4
  %s7 = scalar_select 0, %s6, %s4
  $region1: #{tpu_custom_call.1} parent=0
    #allocation2 [shape = 'u8[32768]{0}', space=vmem, size = 0x8000, scoped, tag = 'input window, operand 0, single buffered']
    #allocation3 [shape = 's32[1]{0}', space=sflag, size = 0x4, scoped, tag = 'scoped memory for tpu_custom_call.1']
    #allocation4 [shape = 's32[1]{0}', space=sflag, size = 0x4, scoped, tag = 'scoped memory for tpu_custom_call.1']
    #allocation5 [shape = 'u8[65536]{0}', space=vmem, size = 0x10000, scoped, tag = 'input window, operand 1, single buffered']
    #allocation6 [shape = 's32[1]{0}', space=sflag, size = 0x4, scoped, tag = 'scoped memory for tpu_custom_call.1']
    #allocation7 [shape = 'u8[32768]{0}', space=vmem, size = 0x8000, scoped, tag = 'output window, operand 0, single buffered']
    %8 = vsyncpa [#allocation3], 0
    %9 = vsyncpa [#allocation6], 0
    %10 = vsyncpa [#allocation4], 0
    // Predicated region
    $region2: #{tpu_custom_call.1} parent=1 // pred_check
      _
    $region3: #{tpu_custom_call.1} parent=1 // pred_check_branch
      %12 = sbr.rel (0) target = $region5
    $region4: #{tpu_custom_call.1} parent=1 // pred_region
      %s14 = ssub.s32 1024, 1024
      %15 = vsyncadd [#allocation3], %s14
      %s16 = sshll.u32 [#allocation2], 4
      %s17 = int_to_ptr.vmem [resolvable:$true] %s16
      %22 = dma.hbm_to_vmem [thread:$0]  %s0, 1024, %s17, [#allocation3], 128, 128, 8
    $region5: #{tpu_custom_call.1} parent=1 // pred_fallthru
      _
    // Predicated region
    $region6: #{tpu_custom_call.1} parent=1 // pred_check
      _
    $region7: #{tpu_custom_call.1} parent=1 // pred_check_branch
      %24 = sbr.rel (0) target = $region9
    $region8: #{tpu_custom_call.1} parent=1 // pred_region
      %s26 = ssub.s32 2048, 2048
      %27 = vsyncadd [#allocation6], %s26
      %s28 = sshll.u32 [#allocation5], 4
      %s29 = int_to_ptr.vmem [resolvable:$true] %s28
      %34 = dma.hbm_to_vmem [thread:$0]  %s1, 2048, %s29, [#allocation6], 128, 128, 8
    $region9: #{tpu_custom_call.1} parent=1 // pred_fallthru
      _
    // Predicated region
    $region10: #{tpu_custom_call.1} parent=1 // pred_check
      _
    $region11: #{tpu_custom_call.1} parent=1 // pred_check_branch
      %36 = sbr.rel (0) target = $region13
    $region12: #{tpu_custom_call.1} parent=1 // pred_region
      _
    $region13: #{tpu_custom_call.1} parent=1 // pred_fallthru
      _
    // Predicated region
    $region14: #{tpu_custom_call.1} parent=1 // pred_check
      _
    $region15: #{tpu_custom_call.1} parent=1 // pred_check_branch
      %38 = sbr.rel (0) target = $region17
    $region16: #{tpu_custom_call.1} parent=1 // pred_region
      %39 = dma.done [#allocation3], 1024
    $region17: #{tpu_custom_call.1} parent=1 // pred_fallthru
      _
    // Predicated region
    $region18: #{tpu_custom_call.1} parent=1 // pred_check
      _
    $region19: #{tpu_custom_call.1} parent=1 // pred_check_branch
      %41 = sbr.rel (0) target = $region21
    $region20: #{tpu_custom_call.1} parent=1 // pred_region
      %42 = dma.done [#allocation6], 2048
    $region21: #{tpu_custom_call.1} parent=1 // pred_fallthru
      _
    %v43 = vld [vmem:[#allocation2] sm:$0xff]
    %v44 = vld [vmem:[#allocation2 + $0x8] sm:$0xff]
    %v45 = vld [vmem:[#allocation2 + $0x10] sm:$0xff]
    %v46 = vld [vmem:[#allocation2 + $0x18] sm:$0xff]
    %v47 = vld [vmem:[#allocation2 + $0x20] sm:$0xff]
    %v48 = vld [vmem:[#allocation2 + $0x28] sm:$0xff]
    %v49 = vld [vmem:[#allocation2 + $0x30] sm:$0xff]
    %v50 = vld [vmem:[#allocation2 + $0x38] sm:$0xff]
    %v51 = vld [vmem:[#allocation5] sm:$0xff]
    %v52 = vld [vmem:[#allocation5 + $0x8] sm:$0xff]
    %v53 = vld [vmem:[#allocation5 + $0x10] sm:$0xff]
    %v54 = vld [vmem:[#allocation5 + $0x18] sm:$0xff]
    %v55 = vld [vmem:[#allocation5 + $0x20] sm:$0xff]
    %v56 = vld [vmem:[#allocation5 + $0x28] sm:$0xff]
    %v57 = vld [vmem:[#allocation5 + $0x30] sm:$0xff]
    %v58 = vld [vmem:[#allocation5 + $0x38] sm:$0xff]
    %v59 = vld [vmem:[#allocation5 + $0x40] sm:$0xff]
    %v60 = vld [vmem:[#allocation5 + $0x48] sm:$0xff]
    %v61 = vld [vmem:[#allocation5 + $0x50] sm:$0xff]
    %v62 = vld [vmem:[#allocation5 + $0x58] sm:$0xff]
    %v63 = vld [vmem:[#allocation5 + $0x60] sm:$0xff]
    %v64 = vld [vmem:[#allocation5 + $0x68] sm:$0xff]
    %v65 = vld [vmem:[#allocation5 + $0x70] sm:$0xff]
    %v66 = vld [vmem:[#allocation5 + $0x78] sm:$0xff]
    %v67 = vld [vmem:[%s2] sm:$0x1]
    %v69 = vlaneseq
    %v70 = vshrl.u32 %v69, 7
    %v71 = vsub.s32 0, %v70
    %v72 = vrot.slane %v67, %v71
    %74 = vmatprep.subr.mxu0 0.0
    %75 = vmatpush1.msra.mxu0 %v51
    %76 = vmatprep.subr.mxu0 0.0
    %77 = vmatpush1.msra.mxu0 %v52
    %78 = vmatprep.subr.mxu0 0.0
    %79 = vmatpush1.msra.mxu0 %v53
    %80 = vmatprep.subr.mxu0 0.0
    %81 = vmatpush1.msra.mxu0 %v54
    %82 = vmatprep.subr.mxu0 0.0
    %83 = vmatpush1.msra.mxu0 %v55
    %84 = vmatprep.subr.mxu0 0.0
    %85 = vmatpush1.msra.mxu0 %v56
    %86 = vmatprep.subr.mxu0 0.0
    %87 = vmatpush1.msra.mxu0 %v57
    %88 = vmatprep.subr.mxu0 0.0
    %89 = vmatpush1.msra.mxu0 %v58
    %90 = vmatprep.subr.mxu0 0.0
    %91 = vmatpush1.msra.mxu0 %v59
    %92 = vmatprep.subr.mxu0 0.0
    %93 = vmatpush1.msra.mxu0 %v60
    %94 = vmatprep.subr.mxu0 0.0
    %95 = vmatpush1.msra.mxu0 %v61
    %96 = vmatprep.subr.mxu0 0.0
    %97 = vmatpush1.msra.mxu0 %v62
    %98 = vmatprep.subr.mxu0 0.0
    %99 = vmatpush1.msra.mxu0 %v63
    %100 = vmatprep.subr.mxu0 0.0
    %101 = vmatpush1.msra.mxu0 %v64
    %102 = vmatprep.subr.mxu0 0.0
    %103 = vmatpush1.msra.mxu0 %v65
    %104 = vmatprep.subr.mxu0 0.0
    %105 = vmatpush1.msra.mxu0 %v66
    %106 = vmatprep.subr.mxu0 0.0
    %107 = vmatpush1.msra.mxu0 0.0
    %108 = vmatprep.subr.mxu0 0.0
    %109 = vmatpush1.msra.mxu0 0.0
    %110 = vmatprep.subr.mxu0 0.0
    %111 = vmatpush1.msra.mxu0 0.0
    %112 = vmatprep.subr.mxu0 0.0
    %113 = vmatpush1.msra.mxu0 0.0
    %114 = vmatprep.subr.mxu0 0.0
    %115 = vmatpush1.msra.mxu0 0.0
    %116 = vmatprep.subr.mxu0 0.0
    %117 = vmatpush1.msra.mxu0 0.0
    %118 = vmatprep.subr.mxu0 0.0
    %119 = vmatpush1.msra.mxu0 0.0
    %120 = vmatprep.subr.mxu0 0.0
    %121 = vmatpush1.msra.mxu0 0.0
    %122 = vmatprep.subr.mxu0 0.0
    %123 = vmatpush1.msra.mxu0 0.0
    %124 = vmatprep.subr.mxu0 0.0
    %125 = vmatpush1.msra.mxu0 0.0
    %126 = vmatprep.subr.mxu0 0.0
    %127 = vmatpush1.msra.mxu0 0.0
    %128 = vmatprep.subr.mxu0 0.0
    %129 = vmatpush1.msra.mxu0 0.0
    %130 = vmatprep.subr.mxu0 0.0
    %131 = vmatpush1.msra.mxu0 0.0
    %132 = vmatprep.subr.mxu0 0.0
    %133 = vmatpush1.msra.mxu0 0.0
    %134 = vmatprep.subr.mxu0 0.0
    %135 = vmatpush1.msra.mxu0 0.0
    %136 = vmatprep.subr.mxu0 0.0
    %137 = vmatpush1.msra.mxu0 0.0
    %138 = vmatprep.mubr.f32.mxu0 0.0
    %139 = vmatmul.mubr.f32.gmra.mrb[0].mxu0 %v43
    %v140 = vpop.f32.mrb[0].mxu0
    %v141 = vadd.f32 %v72, %v140
    %v142 = vpop.f32.mrb[0].mxu0
    %143 = vmatprep.mubr.f32.mxu0 0.0
    %144 = vmatmul.mubr.f32.gmra.mrb[0].mxu0 %v44
    %v145 = vpop.f32.mrb[0].mxu0
    %v146 = vadd.f32 %v72, %v145
    %v147 = vpop.f32.mrb[0].mxu0
    %148 = vmatprep.mubr.f32.mxu0 0.0
    %149 = vmatmul.mubr.f32.gmra.mrb[0].mxu0 %v45
    %v150 = vpop.f32.mrb[0].mxu0
    %v151 = vadd.f32 %v72, %v150
    %v152 = vpop.f32.mrb[0].mxu0
    %153 = vmatprep.mubr.f32.mxu0 0.0
    %154 = vmatmul.mubr.f32.gmra.mrb[0].mxu0 %v46
    %v155 = vpop.f32.mrb[0].mxu0
    %v156 = vadd.f32 %v72, %v155
    %v157 = vpop.f32.mrb[0].mxu0
    %158 = vmatprep.mubr.f32.mxu0 0.0
    %159 = vmatmul.mubr.f32.gmra.mrb[0].mxu0 %v47
    %v160 = vpop.f32.mrb[0].mxu0
    %v161 = vadd.f32 %v72, %v160
    %v162 = vpop.f32.mrb[0].mxu0
    %163 = vmatprep.mubr.f32.mxu0 0.0
    %164 = vmatmul.mubr.f32.gmra.mrb[0].mxu0 %v48
    %v165 = vpop.f32.mrb[0].mxu0
    %v166 = vadd.f32 %v72, %v165
    %v167 = vpop.f32.mrb[0].mxu0
    %168 = vmatprep.mubr.f32.mxu0 0.0
    %169 = vmatmul.mubr.f32.gmra.mrb[0].mxu0 %v49
    %v170 = vpop.f32.mrb[0].mxu0
    %v171 = vadd.f32 %v72, %v170
    %v172 = vpop.f32.mrb[0].mxu0
    %173 = vmatprep.mubr.f32.mxu0 0.0
    %174 = vmatmul.mubr.f32.gmra.mrb[0].mxu0 %v50
    %v175 = vpop.f32.mrb[0].mxu0
    %v176 = vadd.f32 %v72, %v175
    %v177 = vpop.f32.mrb[0].mxu0
    %178 = vdwg.mxu0
    %179 = vst [vmem:[#allocation7] sm:$0xff] %v141
    %180 = vst [vmem:[#allocation7 + $0x8] sm:$0xff] %v146
    %181 = vst [vmem:[#allocation7 + $0x10] sm:$0xff] %v151
    %182 = vst [vmem:[#allocation7 + $0x18] sm:$0xff] %v156
    %183 = vst [vmem:[#allocation7 + $0x20] sm:$0xff] %v161
    %184 = vst [vmem:[#allocation7 + $0x28] sm:$0xff] %v166
    %185 = vst [vmem:[#allocation7 + $0x30] sm:$0xff] %v171
    %186 = vst [vmem:[#allocation7 + $0x38] sm:$0xff] %v176
    // Predicated region
    $region22: #{tpu_custom_call.1} parent=1 // pred_check
      _
    $region23: #{tpu_custom_call.1} parent=1 // pred_check_branch
      %188 = sbr.rel (0) target = $region25
    $region24: #{tpu_custom_call.1} parent=1 // pred_region
      %s190 = ssub.s32 1024, 1024
      %191 = vsyncadd [#allocation4], %s190
      %s192 = sshll.u32 [#allocation7], 4
      %s193 = int_to_ptr.vmem [resolvable:$true] %s192
      %198 = dma.vmem_to_hbm [thread:$0]  %s193, 1024, %s3, [#allocation4], 128, 128, 8
    $region25: #{tpu_custom_call.1} parent=1 // pred_fallthru
      _
    // Predicated region
    $region26: #{tpu_custom_call.1} parent=1 // pred_check
      _
    $region27: #{tpu_custom_call.1} parent=1 // pred_check_branch
      %200 = sbr.rel (0) target = $region29
    $region28: #{tpu_custom_call.1} parent=1 // pred_region
      %201 = dma.done [#allocation4], 1024
    $region29: #{tpu_custom_call.1} parent=1 // pred_fallthru
      _
    %202 = vsyncpa [#allocation3], 1
    %203 = vsyncpa [#allocation6], 1
    %204 = vsyncpa [#allocation4], 1

</llo_original>
